<compile_context>
chip_gen: v5e
topology: v5e:2x2
jax: 0.10.0
libtpu: 0.0.40
codegen_flags: <defaults>
</compile_context>

<pallas_src>
import math

import jax
import jax.numpy as jnp
from jax.experimental import pallas as pl
from jax.experimental.pallas import tpu as pltpu

NODES = 32            # `nodes` in the PyTorch module
LAYERS = 2            # `layers` in the PyTorch module
Y0_BETA = 0.45        # y0.beta
Y0_GRAIN_BETA = 0.12  # y0.grain_beta

TILE_B = 128          # batch tile (lanes); multiple of 128 keeps stores lane-dense.
                      # Working set is tiny, so this can be raised to 512-2048 for
                      # production batches on any of v5e/v6e/v7x without VMEM pressure.

_SQRT_2 = math.sqrt(2.0)
_INV_SQRT_2 = 1.0 / _SQRT_2
_INV_SQRT_2PI = 1.0 / math.sqrt(2.0 * math.pi)

# Error budget vs. torch's exact-erf GELU: A&S erf approximation (~1.5e-7 abs) plus the
# EUP approximate reciprocal inside it, propagated through 3 GELU layers.  Comfortably
# below this tolerance on hardware (and exact-to-fp32 in interpret mode).
ATOL = 2e-3


def _erf(x):
    # Abramowitz & Stegun 7.1.26 rational approximation (max abs err ~1.5e-7).
    p = 0.3275911
    a1, a2, a3, a4, a5 = (0.254829592, -0.284496736, 1.421413741,
                          -1.453152027, 1.061405429)
    s = jnp.where(x >= 0.0, 1.0, -1.0)
    ax = jnp.abs(x)
    # Approximate reciprocal stays on the cheap EUP path (perf review item).
    t = pl.reciprocal(1.0 + p * ax, approx=True)
    poly = ((((a5 * t + a4) * t + a3) * t + a2) * t + a1) * t
    return s * (1.0 - poly * jnp.exp(-ax * ax))


def _gelu_phi_and_grad(z):
    """Returns (phi, g) with gelu(z) = z * phi and gelu'(z) = g.  erf is computed once."""
    phi = 0.5 * (1.0 + _erf(z * _INV_SQRT_2))                # standard normal CDF
    g = phi + z * (_INV_SQRT_2PI * jnp.exp(-0.5 * z * z))    # CDF + z * pdf
    return phi, g


def pinn_kernel(x_ref, w1_ref, b1_ref, wh_ref, bh_ref, wl_ref, c_ref, out_ref):
    """One batch tile.

    Layout: batch points live on lanes, features on sublanes.
      x_ref   : (2, T)              transposed input tile [time; temperature]
      w1_ref  : (NODES, 2)          torch orientation (out, in)
      b1_ref  : (NODES, 1)
      wh_ref  : (L, NODES, NODES)
      bh_ref  : (L, NODES, 1)
      wl_ref  : (2, NODES)
      c_ref   : (2, 1)              folded bl + y0
      out_ref : (4, T)              rows = [y_beta, y_grain_beta, dy0/dt, dy0/dT]
    """
    T = out_ref.shape[-1]
    x = x_ref[...]                                   # (2, T)
    w1 = w1_ref[...]                                 # (NODES, 2)

    # First layer + Jacobian seed:  dh_j/dx_a = gelu'(z_j) * W1[j, a]
    z = jnp.dot(w1, x, preferred_element_type=jnp.float32) + b1_ref[...]   # (NODES, T)
    phi, g = _gelu_phi_and_grad(z)
    s = jnp.concatenate(
        [z * phi, g * w1[:, 0:1], g * w1[:, 1:2]], axis=1)                 # (NODES, 3T)

    # Hidden layers: one fused matmul per layer for [h | dh/dt | dh/dT].
    for i in range(LAYERS):                          # static, small unrolled loop
        w = wh_ref[i]                                # (NODES, NODES)
        a = jnp.dot(w, s, preferred_element_type=jnp.float32)              # (NODES, 3T)
        z = a[:, 0:T] + bh_ref[i]                                          # (NODES, T)
        phi, g = _gelu_phi_and_grad(z)
        s = jnp.concatenate(
            [z * phi, g * a[:, T:2 * T], g * a[:, 2 * T:3 * T]], axis=1)   # (NODES, 3T)

    # Output projection, also fused across [h | dh/dt | dh/dT].
    out_all = jnp.dot(wl_ref[...], s, preferred_element_type=jnp.float32)  # (2, 3T)
    y_rows = out_all[:, 0:T] + c_ref[...]                                  # (2, T)
    out_ref[...] = jnp.concatenate(
        [y_rows, out_all[0:1, T:2 * T], out_all[0:1, 2 * T:3 * T]], axis=0)  # (4, T)


def _resident(arr):
    """Full-array BlockSpec with a constant index_map: fetched once, stays in VMEM."""
    n = arr.ndim
    return pl.BlockSpec(arr.shape, lambda i, _n=n: (0,) * _n)


def pinn_forward_batched(xb, params):
    """Batched PINN forward.

    xb: (B, 2) collocation points, B a multiple of TILE_B.
    Returns (y, jac0) with y: (B, 2) = seq(x) + y0 and
    jac0: (B, 2) = (dy[0]/d time, dy[0]/d temperature) per point.
    """
    w1, b1, wh, bh, wl, c = params
    B = xb.shape[0]
    assert B % TILE_B == 0, "pad the batch to a multiple of TILE_B"
    xt = xb.T                                        # (2, B): batch on lanes

    out = pl.pallas_call(
        pinn_kernel,
        out_shape=jax.ShapeDtypeStruct((4, B), jnp.float32),
        grid=(B // TILE_B,),
        in_specs=[
            pl.BlockSpec((2, TILE_B), lambda i: (0, i)),    # streamed x tile
            _resident(w1),
            _resident(b1),
            _resident(wh),
            _resident(bh),
            _resident(wl),
            _resident(c),
        ],
        out_specs=pl.BlockSpec((4, TILE_B), lambda i: (0, i)),
        compiler_params=pltpu.CompilerParams(
            dimension_semantics=("parallel",)),             # megacore-friendly batch axis
    )(xt, w1, b1, wh, bh, wl, c)

    y = out[0:2, :].T                                # (B, 2)
    jac0 = out[2:4, :].T                             # (B, 2)
    return y, jac0


def pinn_forward(x, params):
    """Mirrors PINN_Model.forward for x of shape (1, 2): (y, (dy0/dx0, dy0/dx1))."""
    xb = jnp.broadcast_to(x, (TILE_B, 2))            # fill one lane-dense tile
    y, jac0 = pinn_forward_batched(xb, params)
    return y[0:1], (jac0[0, 0], jac0[0, 1])


def make_params(key):
    """nn.Linear default init; weights kept in torch (out, in) orientation."""
    assert LAYERS >= 0
    ks = jax.random.split(key, 2 * (LAYERS + 2))

    def lin(kw, kb, fan_in, fan_out):
        bound = 1.0 / math.sqrt(fan_in)
        w = jax.random.uniform(kw, (fan_out, fan_in), jnp.float32, -bound, bound)
        b = jax.random.uniform(kb, (fan_out,), jnp.float32, -bound, bound)
        return w, b

    w1, b1 = lin(ks[0], ks[1], 2, NODES)
    nh = max(LAYERS, 1)                              # avoid zero-sized kernel operands
    wh = jnp.zeros((nh, NODES, NODES), jnp.float32)
    bh = jnp.zeros((nh, NODES, 1), jnp.float32)
    if LAYERS:
        wh_l, bh_l = [], []
        for i in range(LAYERS):
            w, b = lin(ks[2 + 2 * i], ks[3 + 2 * i], NODES, NODES)
            wh_l.append(w)
            bh_l.append(b)
        wh = jnp.stack(wh_l)                         # (LAYERS, NODES, NODES)
        bh = jnp.stack(bh_l)[..., None]              # (LAYERS, NODES, 1)
    wl, bl = lin(ks[-2], ks[-1], NODES, 2)
    y0 = jnp.array([Y0_BETA, Y0_GRAIN_BETA], jnp.float32)
    c = (bl + y0)[:, None]                           # (2, 1) folded bias (bl + y0)
    return (w1, b1[:, None], wh, bh, wl, c)


def ref_forward_batched(xb, params):
    """Pure-JAX reference (exact GELU + jax.jacobian) for validation."""
    w1, b1, wh, bh, wl, c = params

    def f(xv):                                       # xv: (2,)
        h = jax.nn.gelu(w1 @ xv + b1[:, 0], approximate=False)
        for i in range(LAYERS):
            h = jax.nn.gelu(wh[i] @ h + bh[i, :, 0], approximate=False)
        return wl @ h + c[:, 0]

    y = jax.vmap(f)(xb)                              # (B, 2)
    jac = jax.vmap(jax.jacobian(f))(xb)              # (B, 2out, 2in)
    return y, jac[:, 0, :]                           # dy0/dx per point: (B, 2)


if __name__ == "__main__":
    key = jax.random.PRNGKey(0)
    k_x, k_b, k_p = jax.random.split(key, 3)
    params = make_params(k_p)

    # 1) Batched collocation points (the PINN training use case the kernel is tiled for).
    B = 2 * TILE_B
    xb = jax.random.uniform(k_b, (B, 2), jnp.float32, minval=0.0, maxval=1.0)
    y_b, jac_b = jax.jit(pinn_forward_batched)(xb, params)
    jax.block_until_ready((y_b, jac_b))

    y_ref, jac_ref = ref_forward_batched(xb, params)
    assert y_b.shape == (B, 2) and jac_b.shape == (B, 2)
    assert jnp.allclose(y_b, y_ref, atol=ATOL), float(jnp.max(jnp.abs(y_b - y_ref)))
    assert jnp.allclose(jac_b, jac_ref, atol=ATOL), float(jnp.max(jnp.abs(jac_b - jac_ref)))

    # 2) Single (1, 2) = (time, temperature) input, exactly as PINN_Model.forward.
    x = jax.random.uniform(k_x, (1, 2), jnp.float32, minval=0.0, maxval=1.0)
    y, (dy_dt, dy_dT) = jax.jit(pinn_forward)(x, params)
    jax.block_until_ready((y, dy_dt, dy_dT))

    y1_ref, jac1_ref = ref_forward_batched(x, params)
    assert y.shape == (1, 2)
    assert jnp.allclose(y, y1_ref, atol=ATOL), (y, y1_ref)
    assert jnp.allclose(jnp.stack([dy_dt, dy_dT]), jac1_ref[0], atol=ATOL)

    print("KERNEL_OK")
</pallas_src>

<mosaic_0001>
module attributes {stable_mosaic.version = 11 : i64} {
  func.func @pinn_kernel(%arg0: i32, %arg1: memref<2x128xf32, #tpu.memory_space<vmem>>, %arg2: memref<32x2xf32, #tpu.memory_space<vmem>>, %arg3: memref<32x1xf32, #tpu.memory_space<vmem>>, %arg4: memref<2x32x32xf32, #tpu.memory_space<vmem>>, %arg5: memref<2x32x1xf32, #tpu.memory_space<vmem>>, %arg6: memref<2x32xf32, #tpu.memory_space<vmem>>, %arg7: memref<2x1xf32, #tpu.memory_space<vmem>>, %arg8: memref<4x128xf32, #tpu.memory_space<vmem>>) attributes {dimension_semantics = [#tpu.dimension_semantics<parallel>], iteration_bounds = array<i64: 2>, scalar_prefetch = 0 : i64, scratch_operands = 0 : i64, tpu.core_type = #tpu.core_type<tc>, window_params = [{transform_indices = @transform_0, window_bounds = array<i64: 2, 128>}, {pipeline_mode = #tpu.pipeline_mode<synchronous>, transform_indices = @transform_1, window_bounds = array<i64: 32, 2>}, {pipeline_mode = #tpu.pipeline_mode<synchronous>, transform_indices = @transform_2, window_bounds = array<i64: 32, 1>}, {pipeline_mode = #tpu.pipeline_mode<synchronous>, transform_indices = @transform_3, window_bounds = array<i64: 2, 32, 32>}, {pipeline_mode = #tpu.pipeline_mode<synchronous>, transform_indices = @transform_4, window_bounds = array<i64: 2, 32, 1>}, {pipeline_mode = #tpu.pipeline_mode<synchronous>, transform_indices = @transform_5, window_bounds = array<i64: 2, 32>}, {pipeline_mode = #tpu.pipeline_mode<synchronous>, transform_indices = @transform_6, window_bounds = array<i64: 2, 1>}, {transform_indices = @transform_7, window_bounds = array<i64: 4, 128>}]} {
    %c0 = arith.constant 0 : index
    %c0_0 = arith.constant 0 : index
    %0 = vector.load %arg1[%c0, %c0_0] : memref<2x128xf32, #tpu.memory_space<vmem>>, vector<2x128xf32>
    %c0_1 = arith.constant 0 : index
    %c0_2 = arith.constant 0 : index
    %1 = vector.load %arg2[%c0_1, %c0_2] : memref<32x2xf32, #tpu.memory_space<vmem>>, vector<32x2xf32>
    %cst = arith.constant dense<0.000000e+00> : vector<32x128xf32>
    %2 = tpu.matmul %1, %0, %cst {dimension_numbers = #tpu.dot_dimension_numbers<[1], [0], [0], [1], [0, 0, 1, 1], [], []>} : vector<32x2xf32>, vector<2x128xf32>, vector<32x128xf32> -> vector<32x128xf32>
    %c0_3 = arith.constant 0 : index
    %c0_4 = arith.constant 0 : index
    %3 = vector.load %arg3[%c0_3, %c0_4] : memref<32x1xf32, #tpu.memory_space<vmem>>, vector<32x1xf32>
    %4 = vector.broadcast %3 : vector<32x1xf32> to vector<32x128xf32>
    %5 = arith.addf %2, %4 : vector<32x128xf32>
    %cst_5 = arith.constant 0.707106769 : f32
    %6 = vector.broadcast %cst_5 : f32 to vector<32x128xf32>
    %7 = arith.mulf %5, %6 : vector<32x128xf32>
    %cst_6 = arith.constant 0.000000e+00 : f32
    %8 = vector.broadcast %cst_6 : f32 to vector<32x128xf32>
    %9 = arith.cmpf oge, %7, %8 : vector<32x128xf32>
    %cst_7 = arith.constant 1.000000e+00 : f32
    %cst_8 = arith.constant -1.000000e+00 : f32
    %10 = vector.broadcast %cst_7 : f32 to vector<32x128xf32>
    %11 = vector.broadcast %cst_8 : f32 to vector<32x128xf32>
    %12 = arith.select %9, %10, %11 : vector<32x128xi1>, vector<32x128xf32>
    %13 = math.absf %7 : vector<32x128xf32>
    %cst_9 = arith.constant 0.327591091 : f32
    %14 = vector.broadcast %cst_9 : f32 to vector<32x128xf32>
    %15 = arith.mulf %14, %13 : vector<32x128xf32>
    %cst_10 = arith.constant 1.000000e+00 : f32
    %16 = vector.broadcast %cst_10 : f32 to vector<32x128xf32>
    %17 = arith.addf %16, %15 : vector<32x128xf32>
    %18 = tpu.reciprocal %17 {approx = true} : vector<32x128xf32> -> vector<32x128xf32>
    %cst_11 = arith.constant 1.06140542 : f32
    %19 = vector.broadcast %cst_11 : f32 to vector<32x128xf32>
    %20 = arith.mulf %19, %18 : vector<32x128xf32>
    %cst_12 = arith.constant -1.45315206 : f32
    %21 = vector.broadcast %cst_12 : f32 to vector<32x128xf32>
    %22 = arith.addf %20, %21 : vector<32x128xf32>
    %23 = arith.mulf %22, %18 : vector<32x128xf32>
    %cst_13 = arith.constant 1.42141378 : f32
    %24 = vector.broadcast %cst_13 : f32 to vector<32x128xf32>
    %25 = arith.addf %23, %24 : vector<32x128xf32>
    %26 = arith.mulf %25, %18 : vector<32x128xf32>
    %cst_14 = arith.constant -0.284496725 : f32
    %27 = vector.broadcast %cst_14 : f32 to vector<32x128xf32>
    %28 = arith.addf %26, %27 : vector<32x128xf32>
    %29 = arith.mulf %28, %18 : vector<32x128xf32>
    %cst_15 = arith.constant 0.254829586 : f32
    %30 = vector.broadcast %cst_15 : f32 to vector<32x128xf32>
    %31 = arith.addf %29, %30 : vector<32x128xf32>
    %32 = arith.mulf %31, %18 : vector<32x128xf32>
    %cst_16 = arith.constant 0.000000e+00 : f32
    %33 = vector.broadcast %cst_16 : f32 to vector<32x128xf32>
    %34 = arith.subf %33, %13 : vector<32x128xf32>
    %35 = arith.mulf %34, %13 : vector<32x128xf32>
    %36 = math.exp %35 : vector<32x128xf32>
    %37 = arith.mulf %32, %36 : vector<32x128xf32>
    %cst_17 = arith.constant 1.000000e+00 : f32
    %38 = vector.broadcast %cst_17 : f32 to vector<32x128xf32>
    %39 = arith.subf %38, %37 : vector<32x128xf32>
    %40 = arith.mulf %12, %39 : vector<32x128xf32>
    %cst_18 = arith.constant 1.000000e+00 : f32
    %41 = vector.broadcast %cst_18 : f32 to vector<32x128xf32>
    %42 = arith.addf %41, %40 : vector<32x128xf32>
    %cst_19 = arith.constant 5.000000e-01 : f32
    %43 = vector.broadcast %cst_19 : f32 to vector<32x128xf32>
    %44 = arith.mulf %43, %42 : vector<32x128xf32>
    %cst_20 = arith.constant -5.000000e-01 : f32
    %45 = vector.broadcast %cst_20 : f32 to vector<32x128xf32>
    %46 = arith.mulf %45, %5 : vector<32x128xf32>
    %47 = arith.mulf %46, %5 : vector<32x128xf32>
    %48 = math.exp %47 : vector<32x128xf32>
    %cst_21 = arith.constant 0.398942292 : f32
    %49 = vector.broadcast %cst_21 : f32 to vector<32x128xf32>
    %50 = arith.mulf %49, %48 : vector<32x128xf32>
    %51 = arith.mulf %5, %50 : vector<32x128xf32>
    %52 = arith.addf %44, %51 : vector<32x128xf32>
    %53 = arith.mulf %5, %44 : vector<32x128xf32>
    %54 = vector.extract_strided_slice %1 {offsets = [0, 0], sizes = [32, 1], strides = [1, 1]} : vector<32x2xf32> to vector<32x1xf32>
    %55 = vector.broadcast %54 : vector<32x1xf32> to vector<32x128xf32>
    %56 = arith.mulf %52, %55 : vector<32x128xf32>
    %57 = vector.extract_strided_slice %1 {offsets = [0, 1], sizes = [32, 1], strides = [1, 1]} : vector<32x2xf32> to vector<32x1xf32>
    %58 = vector.broadcast %57 : vector<32x1xf32> to vector<32x128xf32>
    %59 = arith.mulf %52, %58 : vector<32x128xf32>
    %60 = tpu.concatenate %53, %56, %59 in 1 : vector<32x128xf32>, vector<32x128xf32>, vector<32x128xf32> -> vector<32x384xf32>
    %c0_22 = arith.constant 0 : index
    %c0_23 = arith.constant 0 : index
    %c0_24 = arith.constant 0 : index
    %61 = vector.load %arg4[%c0_22, %c0_23, %c0_24] : memref<2x32x32xf32, #tpu.memory_space<vmem>>, vector<1x32x32xf32>
    %62 = vector.shape_cast %61 : vector<1x32x32xf32> to vector<32x32xf32>
    %cst_25 = arith.constant dense<0.000000e+00> : vector<32x384xf32>
    %63 = tpu.matmul %62, %60, %cst_25 {dimension_numbers = #tpu.dot_dimension_numbers<[1], [0], [0], [1], [0, 0, 1, 1], [], []>} : vector<32x32xf32>, vector<32x384xf32>, vector<32x384xf32> -> vector<32x384xf32>
    %64 = vector.extract_strided_slice %63 {offsets = [0, 0], sizes = [32, 128], strides = [1, 1]} : vector<32x384xf32> to vector<32x128xf32>
    %c0_26 = arith.constant 0 : index
    %c0_27 = arith.constant 0 : index
    %c0_28 = arith.constant 0 : index
    %65 = vector.load %arg5[%c0_26, %c0_27, %c0_28] : memref<2x32x1xf32, #tpu.memory_space<vmem>>, vector<1x32x1xf32>
    %66 = vector.shape_cast %65 : vector<1x32x1xf32> to vector<32x1xf32>
    %67 = vector.broadcast %66 : vector<32x1xf32> to vector<32x128xf32>
    %68 = arith.addf %64, %67 : vector<32x128xf32>
    %cst_29 = arith.constant 0.707106769 : f32
    %69 = vector.broadcast %cst_29 : f32 to vector<32x128xf32>
    %70 = arith.mulf %68, %69 : vector<32x128xf32>
    %cst_30 = arith.constant 0.000000e+00 : f32
    %71 = vector.broadcast %cst_30 : f32 to vector<32x128xf32>
    %72 = arith.cmpf oge, %70, %71 : vector<32x128xf32>
    %cst_31 = arith.constant 1.000000e+00 : f32
    %cst_32 = arith.constant -1.000000e+00 : f32
    %73 = vector.broadcast %cst_31 : f32 to vector<32x128xf32>
    %74 = vector.broadcast %cst_32 : f32 to vector<32x128xf32>
    %75 = arith.select %72, %73, %74 : vector<32x128xi1>, vector<32x128xf32>
    %76 = math.absf %70 : vector<32x128xf32>
    %cst_33 = arith.constant 0.327591091 : f32
    %77 = vector.broadcast %cst_33 : f32 to vector<32x128xf32>
    %78 = arith.mulf %77, %76 : vector<32x128xf32>
    %cst_34 = arith.constant 1.000000e+00 : f32
    %79 = vector.broadcast %cst_34 : f32 to vector<32x128xf32>
    %80 = arith.addf %79, %78 : vector<32x128xf32>
    %81 = tpu.reciprocal %80 {approx = true} : vector<32x128xf32> -> vector<32x128xf32>
    %cst_35 = arith.constant 1.06140542 : f32
    %82 = vector.broadcast %cst_35 : f32 to vector<32x128xf32>
    %83 = arith.mulf %82, %81 : vector<32x128xf32>
    %cst_36 = arith.constant -1.45315206 : f32
    %84 = vector.broadcast %cst_36 : f32 to vector<32x128xf32>
    %85 = arith.addf %83, %84 : vector<32x128xf32>
    %86 = arith.mulf %85, %81 : vector<32x128xf32>
    %cst_37 = arith.constant 1.42141378 : f32
    %87 = vector.broadcast %cst_37 : f32 to vector<32x128xf32>
    %88 = arith.addf %86, %87 : vector<32x128xf32>
    %89 = arith.mulf %88, %81 : vector<32x128xf32>
    %cst_38 = arith.constant -0.284496725 : f32
    %90 = vector.broadcast %cst_38 : f32 to vector<32x128xf32>
    %91 = arith.addf %89, %90 : vector<32x128xf32>
    %92 = arith.mulf %91, %81 : vector<32x128xf32>
    %cst_39 = arith.constant 0.254829586 : f32
    %93 = vector.broadcast %cst_39 : f32 to vector<32x128xf32>
    %94 = arith.addf %92, %93 : vector<32x128xf32>
    %95 = arith.mulf %94, %81 : vector<32x128xf32>
    %cst_40 = arith.constant 0.000000e+00 : f32
    %96 = vector.broadcast %cst_40 : f32 to vector<32x128xf32>
    %97 = arith.subf %96, %76 : vector<32x128xf32>
    %98 = arith.mulf %97, %76 : vector<32x128xf32>
    %99 = math.exp %98 : vector<32x128xf32>
    %100 = arith.mulf %95, %99 : vector<32x128xf32>
    %cst_41 = arith.constant 1.000000e+00 : f32
    %101 = vector.broadcast %cst_41 : f32 to vector<32x128xf32>
    %102 = arith.subf %101, %100 : vector<32x128xf32>
    %103 = arith.mulf %75, %102 : vector<32x128xf32>
    %cst_42 = arith.constant 1.000000e+00 : f32
    %104 = vector.broadcast %cst_42 : f32 to vector<32x128xf32>
    %105 = arith.addf %104, %103 : vector<32x128xf32>
    %cst_43 = arith.constant 5.000000e-01 : f32
    %106 = vector.broadcast %cst_43 : f32 to vector<32x128xf32>
    %107 = arith.mulf %106, %105 : vector<32x128xf32>
    %cst_44 = arith.constant -5.000000e-01 : f32
    %108 = vector.broadcast %cst_44 : f32 to vector<32x128xf32>
    %109 = arith.mulf %108, %68 : vector<32x128xf32>
    %110 = arith.mulf %109, %68 : vector<32x128xf32>
    %111 = math.exp %110 : vector<32x128xf32>
    %cst_45 = arith.constant 0.398942292 : f32
    %112 = vector.broadcast %cst_45 : f32 to vector<32x128xf32>
    %113 = arith.mulf %112, %111 : vector<32x128xf32>
    %114 = arith.mulf %68, %113 : vector<32x128xf32>
    %115 = arith.addf %107, %114 : vector<32x128xf32>
    %116 = arith.mulf %68, %107 : vector<32x128xf32>
    %117 = vector.extract_strided_slice %63 {offsets = [0, 128], sizes = [32, 128], strides = [1, 1]} : vector<32x384xf32> to vector<32x128xf32>
    %118 = arith.mulf %115, %117 : vector<32x128xf32>
    %119 = vector.extract_strided_slice %63 {offsets = [0, 256], sizes = [32, 128], strides = [1, 1]} : vector<32x384xf32> to vector<32x128xf32>
    %120 = arith.mulf %115, %119 : vector<32x128xf32>
    %121 = tpu.concatenate %116, %118, %120 in 1 : vector<32x128xf32>, vector<32x128xf32>, vector<32x128xf32> -> vector<32x384xf32>
    %c1 = arith.constant 1 : index
    %c0_46 = arith.constant 0 : index
    %c0_47 = arith.constant 0 : index
    %122 = vector.load %arg4[%c1, %c0_46, %c0_47] : memref<2x32x32xf32, #tpu.memory_space<vmem>>, vector<1x32x32xf32>
    %123 = vector.shape_cast %122 : vector<1x32x32xf32> to vector<32x32xf32>
    %cst_48 = arith.constant dense<0.000000e+00> : vector<32x384xf32>
    %124 = tpu.matmul %123, %121, %cst_48 {dimension_numbers = #tpu.dot_dimension_numbers<[1], [0], [0], [1], [0, 0, 1, 1], [], []>} : vector<32x32xf32>, vector<32x384xf32>, vector<32x384xf32> -> vector<32x384xf32>
    %125 = vector.extract_strided_slice %124 {offsets = [0, 0], sizes = [32, 128], strides = [1, 1]} : vector<32x384xf32> to vector<32x128xf32>
    %c1_49 = arith.constant 1 : index
    %c0_50 = arith.constant 0 : index
    %c0_51 = arith.constant 0 : index
    %126 = vector.load %arg5[%c1_49, %c0_50, %c0_51] : memref<2x32x1xf32, #tpu.memory_space<vmem>>, vector<1x32x1xf32>
    %127 = vector.shape_cast %126 : vector<1x32x1xf32> to vector<32x1xf32>
    %128 = vector.broadcast %127 : vector<32x1xf32> to vector<32x128xf32>
    %129 = arith.addf %125, %128 : vector<32x128xf32>
    %cst_52 = arith.constant 0.707106769 : f32
    %130 = vector.broadcast %cst_52 : f32 to vector<32x128xf32>
    %131 = arith.mulf %129, %130 : vector<32x128xf32>
    %cst_53 = arith.constant 0.000000e+00 : f32
    %132 = vector.broadcast %cst_53 : f32 to vector<32x128xf32>
    %133 = arith.cmpf oge, %131, %132 : vector<32x128xf32>
    %cst_54 = arith.constant 1.000000e+00 : f32
    %cst_55 = arith.constant -1.000000e+00 : f32
    %134 = vector.broadcast %cst_54 : f32 to vector<32x128xf32>
    %135 = vector.broadcast %cst_55 : f32 to vector<32x128xf32>
    %136 = arith.select %133, %134, %135 : vector<32x128xi1>, vector<32x128xf32>
    %137 = math.absf %131 : vector<32x128xf32>
    %cst_56 = arith.constant 0.327591091 : f32
    %138 = vector.broadcast %cst_56 : f32 to vector<32x128xf32>
    %139 = arith.mulf %138, %137 : vector<32x128xf32>
    %cst_57 = arith.constant 1.000000e+00 : f32
    %140 = vector.broadcast %cst_57 : f32 to vector<32x128xf32>
    %141 = arith.addf %140, %139 : vector<32x128xf32>
    %142 = tpu.reciprocal %141 {approx = true} : vector<32x128xf32> -> vector<32x128xf32>
    %cst_58 = arith.constant 1.06140542 : f32
    %143 = vector.broadcast %cst_58 : f32 to vector<32x128xf32>
    %144 = arith.mulf %143, %142 : vector<32x128xf32>
    %cst_59 = arith.constant -1.45315206 : f32
    %145 = vector.broadcast %cst_59 : f32 to vector<32x128xf32>
    %146 = arith.addf %144, %145 : vector<32x128xf32>
    %147 = arith.mulf %146, %142 : vector<32x128xf32>
    %cst_60 = arith.constant 1.42141378 : f32
    %148 = vector.broadcast %cst_60 : f32 to vector<32x128xf32>
    %149 = arith.addf %147, %148 : vector<32x128xf32>
    %150 = arith.mulf %149, %142 : vector<32x128xf32>
    %cst_61 = arith.constant -0.284496725 : f32
    %151 = vector.broadcast %cst_61 : f32 to vector<32x128xf32>
    %152 = arith.addf %150, %151 : vector<32x128xf32>
    %153 = arith.mulf %152, %142 : vector<32x128xf32>
    %cst_62 = arith.constant 0.254829586 : f32
    %154 = vector.broadcast %cst_62 : f32 to vector<32x128xf32>
    %155 = arith.addf %153, %154 : vector<32x128xf32>
    %156 = arith.mulf %155, %142 : vector<32x128xf32>
    %cst_63 = arith.constant 0.000000e+00 : f32
    %157 = vector.broadcast %cst_63 : f32 to vector<32x128xf32>
    %158 = arith.subf %157, %137 : vector<32x128xf32>
    %159 = arith.mulf %158, %137 : vector<32x128xf32>
    %160 = math.exp %159 : vector<32x128xf32>
    %161 = arith.mulf %156, %160 : vector<32x128xf32>
    %cst_64 = arith.constant 1.000000e+00 : f32
    %162 = vector.broadcast %cst_64 : f32 to vector<32x128xf32>
    %163 = arith.subf %162, %161 : vector<32x128xf32>
    %164 = arith.mulf %136, %163 : vector<32x128xf32>
    %cst_65 = arith.constant 1.000000e+00 : f32
    %165 = vector.broadcast %cst_65 : f32 to vector<32x128xf32>
    %166 = arith.addf %165, %164 : vector<32x128xf32>
    %cst_66 = arith.constant 5.000000e-01 : f32
    %167 = vector.broadcast %cst_66 : f32 to vector<32x128xf32>
    %168 = arith.mulf %167, %166 : vector<32x128xf32>
    %cst_67 = arith.constant -5.000000e-01 : f32
    %169 = vector.broadcast %cst_67 : f32 to vector<32x128xf32>
    %170 = arith.mulf %169, %129 : vector<32x128xf32>
    %171 = arith.mulf %170, %129 : vector<32x128xf32>
    %172 = math.exp %171 : vector<32x128xf32>
    %cst_68 = arith.constant 0.398942292 : f32
    %173 = vector.broadcast %cst_68 : f32 to vector<32x128xf32>
    %174 = arith.mulf %173, %172 : vector<32x128xf32>
    %175 = arith.mulf %129, %174 : vector<32x128xf32>
    %176 = arith.addf %168, %175 : vector<32x128xf32>
    %177 = arith.mulf %129, %168 : vector<32x128xf32>
    %178 = vector.extract_strided_slice %124 {offsets = [0, 128], sizes = [32, 128], strides = [1, 1]} : vector<32x384xf32> to vector<32x128xf32>
    %179 = arith.mulf %176, %178 : vector<32x128xf32>
    %180 = vector.extract_strided_slice %124 {offsets = [0, 256], sizes = [32, 128], strides = [1, 1]} : vector<32x384xf32> to vector<32x128xf32>
    %181 = arith.mulf %176, %180 : vector<32x128xf32>
    %182 = tpu.concatenate %177, %179, %181 in 1 : vector<32x128xf32>, vector<32x128xf32>, vector<32x128xf32> -> vector<32x384xf32>
    %c0_69 = arith.constant 0 : index
    %c0_70 = arith.constant 0 : index
    %183 = vector.load %arg6[%c0_69, %c0_70] : memref<2x32xf32, #tpu.memory_space<vmem>>, vector<2x32xf32>
    %cst_71 = arith.constant dense<0.000000e+00> : vector<2x384xf32>
    %184 = tpu.matmul %183, %182, %cst_71 {dimension_numbers = #tpu.dot_dimension_numbers<[1], [0], [0], [1], [0, 0, 1, 1], [], []>} : vector<2x32xf32>, vector<32x384xf32>, vector<2x384xf32> -> vector<2x384xf32>
    %185 = vector.extract_strided_slice %184 {offsets = [0, 0], sizes = [2, 128], strides = [1, 1]} : vector<2x384xf32> to vector<2x128xf32>
    %c0_72 = arith.constant 0 : index
    %c0_73 = arith.constant 0 : index
    %186 = vector.load %arg7[%c0_72, %c0_73] : memref<2x1xf32, #tpu.memory_space<vmem>>, vector<2x1xf32>
    %187 = vector.broadcast %186 : vector<2x1xf32> to vector<2x128xf32>
    %188 = arith.addf %185, %187 : vector<2x128xf32>
    %189 = vector.extract_strided_slice %184 {offsets = [0, 128], sizes = [1, 128], strides = [1, 1]} : vector<2x384xf32> to vector<1x128xf32>
    %190 = vector.extract_strided_slice %184 {offsets = [0, 256], sizes = [1, 128], strides = [1, 1]} : vector<2x384xf32> to vector<1x128xf32>
    %191 = tpu.concatenate %188, %189, %190 in 0 : vector<2x128xf32>, vector<1x128xf32>, vector<1x128xf32> -> vector<4x128xf32>
    %c0_74 = arith.constant 0 : index
    %c0_75 = arith.constant 0 : index
    %192 = vector.load %arg8[%c0_74, %c0_75] : memref<4x128xf32, #tpu.memory_space<vmem>>, vector<4x128xf32>
    tpu.vector_store %arg8[%c0_74, %c0_75], %191 {strides = array<i32>} : memref<4x128xf32, #tpu.memory_space<vmem>>, vector<4x128xf32>,
    return
  }
  func.func @transform_0(%arg0: i32) -> (i32, i32) {
    %c0_i32 = arith.constant 0 : i32
    %c0_i32_0 = arith.constant 0 : i32
    return %c0_i32, %arg0 : i32, i32
  }
  func.func @transform_1(%arg0: i32) -> (i32, i32) {
    %c0_i32 = arith.constant 0 : i32
    %c0_i32_0 = arith.constant 0 : i32
    %c0_i32_1 = arith.constant 0 : i32
    return %c0_i32, %c0_i32_0 : i32, i32
  }
  func.func @transform_2(%arg0: i32) -> (i32, i32) {
    %c0_i32 = arith.constant 0 : i32
    %c0_i32_0 = arith.constant 0 : i32
    %c0_i32_1 = arith.constant 0 : i32
    return %c0_i32, %c0_i32_0 : i32, i32
  }
  func.func @transform_3(%arg0: i32) -> (i32, i32, i32) {
    %c0_i32 = arith.constant 0 : i32
    %c0_i32_0 = arith.constant 0 : i32
    %c0_i32_1 = arith.constant 0 : i32
    %c0_i32_2 = arith.constant 0 : i32
    return %c0_i32, %c0_i32_0, %c0_i32_1 : i32, i32, i32
  }
  func.func @transform_4(%arg0: i32) -> (i32, i32, i32) {
    %c0_i32 = arith.constant 0 : i32
    %c0_i32_0 = arith.constant 0 : i32
    %c0_i32_1 = arith.constant 0 : i32
    %c0_i32_2 = arith.constant 0 : i32
    return %c0_i32, %c0_i32_0, %c0_i32_1 : i32, i32, i32
  }
  func.func @transform_5(%arg0: i32) -> (i32, i32) {
    %c0_i32 = arith.constant 0 : i32
    %c0_i32_0 = arith.constant 0 : i32
    %c0_i32_1 = arith.constant 0 : i32
    return %c0_i32, %c0_i32_0 : i32, i32
  }
  func.func @transform_6(%arg0: i32) -> (i32, i32) {
    %c0_i32 = arith.constant 0 : i32
    %c0_i32_0 = arith.constant 0 : i32
    %c0_i32_1 = arith.constant 0 : i32
    return %c0_i32, %c0_i32_0 : i32, i32
  }
  func.func @transform_7(%arg0: i32) -> (i32, i32) {
    %c0_i32 = arith.constant 0 : i32
    %c0_i32_0 = arith.constant 0 : i32
    return %c0_i32, %arg0 : i32, i32
  }
}

</mosaic_0001>

<llo_original>
// kernel: pinn_forward_batched.1
$region0: #{pinn_forward_batched.1}
  #allocation0 [shape = 'u32[]', space=smem, size = 0x4, offset = 0x4, fixed_abs, tag = 'smem constant byte address 0x4 - core index']
  #allocation1 [shape = 'u32[72,128]{1,0:T(1,128)}', space=vmem, size = 0x9000, scoped, tag = 'internal scratch']
  %s0 = inlined_call_operand.vmem [shape: f32[2,256], index: 0, kind: input, shape index: {}]
  %s1 = inlined_call_operand.vmem [shape: f32[32,2], index: 1, kind: input, shape index: {}]
  %s2 = inlined_call_operand.vmem [shape: f32[32,1], index: 2, kind: input, shape index: {}]
  %s3 = inlined_call_operand.vmem [shape: f32[2,32,32], index: 3, kind: input, shape index: {}]
  %s4 = inlined_call_operand.vmem [shape: f32[2,32,1], index: 4, kind: input, shape index: {}]
  %s5 = inlined_call_operand.vmem [shape: f32[2,32], index: 5, kind: input, shape index: {}]
  %s6 = inlined_call_operand.vmem [shape: f32[2,1], index: 6, kind: input, shape index: {}]
  %s7 = inlined_call_operand.vmem [shape: f32[4,256], index: 7, kind: output, shape index: {}]
  %s8 = sld [smem:[#allocation0]]
  $region61: #{pinn_forward_batched.1} parent=0
    _
  %s10 = ssub.s32 1, %s8
  %s11 = scalar_select 0, %s10, %s8
  loop: start=0, step=1, limit=4
  $region2: #{pinn_forward_batched.1} parent=0 // loop_pre_header
    _
  $region3: #{pinn_forward_batched.1} parent=0 // loop_header
    %s13 = sphi 0, %s17
    %p14 = scmp.ge.s32.totalorder %s13, 4
    %s23 = sphi 0, %s25
    %s26 = sphi 0, %s23
    %s27 = sphi 0, %s26
    %s43 = sphi 0, %s27
    %s47 = sphi 0, %s47
    %s49 = sphi 0, %s47
    %s50 = sphi 0, %s49
    %s64 = sphi 0, %s50
    %s68 = sphi 0, %s68
    %s70 = sphi 0, %s68
    %s71 = sphi 0, %s70
    %s85 = sphi 0, %s71
    %s89 = sphi 0, %s89
    %s91 = sphi 0, %s89
    %s92 = sphi 0, %s91
    %s106 = sphi 0, %s92
    %s110 = sphi 0, %s110
    %s112 = sphi 0, %s110
    %s113 = sphi 0, %s112
    %s127 = sphi 0, %s113
    %s131 = sphi 0, %s131
    %s133 = sphi 0, %s131
    %s134 = sphi 0, %s133
    %s148 = sphi 0, %s134
    %s152 = sphi 0, %s152
    %s154 = sphi 0, %s152
    %s155 = sphi 0, %s154
    %s169 = sphi 0, %s155
    %s175 = sphi 0, %s177
    %s178 = sphi 0, %s175
    %s179 = sphi 0, %s178
    %s195 = sphi 0, %s179
  $region4: #{pinn_forward_batched.1} parent=0 // loop_header_branch
    %16 = sbr.rel (%p14) target = $region8
  $region5: #{pinn_forward_batched.1} parent=0 // loop_body
    %s18 = ssub.s32 %s13, 1
    %s19 = ssub.s32 %s13, 2
    %s20 = sadd.s32 %s13, 1
    %s21 = ssub.s32 %s13, %s20
    %p22 = scmp.eq.s32.totalorder %s21, 0
    %s24 = sadd.s32 %s23, 1
    %s25 = scalar_select %p22, %s23, %s24
    %p28 = pneg %p22
    %p29 = scmp.eq.s32.totalorder %s13, 1
    %p30 = por %p28, %p29
    %p31 = scmp.ne.s32.totalorder %s23, %s26
    %p32 = scmp.eq.s32.totalorder %s13, 0
    %p33 = por %p31, %p32
    %p34 = scmp.ne.s32.totalorder %s23, %s26
    %p35 = scmp.eq.s32.totalorder %s18, 1
    %p36 = por %p34, %p35
    %p37 = scmp.ne.s32.totalorder %s26, %s27
    %p38 = scmp.eq.s32.totalorder %s18, 0
    %p39 = por %p37, %p38
    %p40 = scmp.ne.s32.totalorder %s26, %s27
    %p41 = scmp.eq.s32.totalorder %s19, 1
    %p42 = por %p40, %p41
    %p44 = scmp.ne.s32.totalorder %s27, %s43
    %p45 = scmp.eq.s32.totalorder %s19, 0
    %p46 = por %p44, %p45
    %s48 = sadd.s32 %s47, 1
    %p51 = scmp.eq.s32.totalorder %s13, 1
    %p52 = scmp.ne.s32.totalorder %s47, %s49
    %p53 = scmp.eq.s32.totalorder %s13, 0
    %p54 = por %p52, %p53
    %p55 = scmp.ne.s32.totalorder %s47, %s49
    %p56 = scmp.eq.s32.totalorder %s18, 1
    %p57 = por %p55, %p56
    %p58 = scmp.ne.s32.totalorder %s49, %s50
    %p59 = scmp.eq.s32.totalorder %s18, 0
    %p60 = por %p58, %p59
    %p61 = scmp.ne.s32.totalorder %s49, %s50
    %p62 = scmp.eq.s32.totalorder %s19, 1
    %p63 = por %p61, %p62
    %p65 = scmp.ne.s32.totalorder %s50, %s64
    %p66 = scmp.eq.s32.totalorder %s19, 0
    %p67 = por %p65, %p66
    %s69 = sadd.s32 %s68, 1
    %p72 = scmp.eq.s32.totalorder %s13, 1
    %p73 = scmp.ne.s32.totalorder %s68, %s70
    %p74 = scmp.eq.s32.totalorder %s13, 0
    %p75 = por %p73, %p74
    %p76 = scmp.ne.s32.totalorder %s68, %s70
    %p77 = scmp.eq.s32.totalorder %s18, 1
    %p78 = por %p76, %p77
    %p79 = scmp.ne.s32.totalorder %s70, %s71
    %p80 = scmp.eq.s32.totalorder %s18, 0
    %p81 = por %p79, %p80
    %p82 = scmp.ne.s32.totalorder %s70, %s71
    %p83 = scmp.eq.s32.totalorder %s19, 1
    %p84 = por %p82, %p83
    %p86 = scmp.ne.s32.totalorder %s71, %s85
    %p87 = scmp.eq.s32.totalorder %s19, 0
    %p88 = por %p86, %p87
    %s90 = sadd.s32 %s89, 1
    %p93 = scmp.eq.s32.totalorder %s13, 1
    %p94 = scmp.ne.s32.totalorder %s89, %s91
    %p95 = scmp.eq.s32.totalorder %s13, 0
    %p96 = por %p94, %p95
    %p97 = scmp.ne.s32.totalorder %s89, %s91
    %p98 = scmp.eq.s32.totalorder %s18, 1
    %p99 = por %p97, %p98
    %p100 = scmp.ne.s32.totalorder %s91, %s92
    %p101 = scmp.eq.s32.totalorder %s18, 0
    %p102 = por %p100, %p101
    %p103 = scmp.ne.s32.totalorder %s91, %s92
    %p104 = scmp.eq.s32.totalorder %s19, 1
    %p105 = por %p103, %p104
    %p107 = scmp.ne.s32.totalorder %s92, %s106
    %p108 = scmp.eq.s32.totalorder %s19, 0
    %p109 = por %p107, %p108
    %s111 = sadd.s32 %s110, 1
    %p114 = scmp.eq.s32.totalorder %s13, 1
    %p115 = scmp.ne.s32.totalorder %s110, %s112
    %p116 = scmp.eq.s32.totalorder %s13, 0
    %p117 = por %p115, %p116
    %p118 = scmp.ne.s32.totalorder %s110, %s112
    %p119 = scmp.eq.s32.totalorder %s18, 1
    %p120 = por %p118, %p119
    %p121 = scmp.ne.s32.totalorder %s112, %s113
    %p122 = scmp.eq.s32.totalorder %s18, 0
    %p123 = por %p121, %p122
    %p124 = scmp.ne.s32.totalorder %s112, %s113
    %p125 = scmp.eq.s32.totalorder %s19, 1
    %p126 = por %p124, %p125
    %p128 = scmp.ne.s32.totalorder %s113, %s127
    %p129 = scmp.eq.s32.totalorder %s19, 0
    %p130 = por %p128, %p129
    %s132 = sadd.s32 %s131, 1
    %p135 = scmp.eq.s32.totalorder %s13, 1
    %p136 = scmp.ne.s32.totalorder %s131, %s133
    %p137 = scmp.eq.s32.totalorder %s13, 0
    %p138 = por %p136, %p137
    %p139 = scmp.ne.s32.totalorder %s131, %s133
    %p140 = scmp.eq.s32.totalorder %s18, 1
    %p141 = por %p139, %p140
    %p142 = scmp.ne.s32.totalorder %s133, %s134
    %p143 = scmp.eq.s32.totalorder %s18, 0
    %p144 = por %p142, %p143
    %p145 = scmp.ne.s32.totalorder %s133, %s134
    %p146 = scmp.eq.s32.totalorder %s19, 1
    %p147 = por %p145, %p146
    %p149 = scmp.ne.s32.totalorder %s134, %s148
    %p150 = scmp.eq.s32.totalorder %s19, 0
    %p151 = por %p149, %p150
    %s153 = sadd.s32 %s152, 1
    %p156 = scmp.eq.s32.totalorder %s13, 1
    %p157 = scmp.ne.s32.totalorder %s152, %s154
    %p158 = scmp.eq.s32.totalorder %s13, 0
    %p159 = por %p157, %p158
    %p160 = scmp.ne.s32.totalorder %s152, %s154
    %p161 = scmp.eq.s32.totalorder %s18, 1
    %p162 = por %p160, %p161
    %p163 = scmp.ne.s32.totalorder %s154, %s155
    %p164 = scmp.eq.s32.totalorder %s18, 0
    %p165 = por %p163, %p164
    %p166 = scmp.ne.s32.totalorder %s154, %s155
    %p167 = scmp.eq.s32.totalorder %s19, 1
    %p168 = por %p166, %p167
    %p170 = scmp.ne.s32.totalorder %s155, %s169
    %p171 = scmp.eq.s32.totalorder %s19, 0
    %p172 = por %p170, %p171
    %s173 = ssub.s32 %s13, %s20
    %p174 = scmp.eq.s32.totalorder %s173, 0
    %s176 = sadd.s32 %s175, 1
    %s177 = scalar_select %p174, %s175, %s176
    %p180 = pneg %p174
    %p181 = scmp.eq.s32.totalorder %s13, 1
    %p182 = por %p180, %p181
    %p183 = scmp.ne.s32.totalorder %s175, %s178
    %p184 = scmp.eq.s32.totalorder %s13, 0
    %p185 = por %p183, %p184
    %p186 = scmp.ne.s32.totalorder %s175, %s178
    %p187 = scmp.eq.s32.totalorder %s18, 1
    %p188 = por %p186, %p187
    %p189 = scmp.ne.s32.totalorder %s178, %s179
    %p190 = scmp.eq.s32.totalorder %s18, 0
    %p191 = por %p189, %p190
    %p192 = scmp.ne.s32.totalorder %s178, %s179
    %p193 = scmp.eq.s32.totalorder %s19, 1
    %p194 = por %p192, %p193
    %p196 = scmp.ne.s32.totalorder %s179, %s195
    %p197 = scmp.eq.s32.totalorder %s19, 0
    %p198 = por %p196, %p197
    %p199 = scmp.le.s32.totalorder 1, %s13
    %p200 = scmp.lt.s32.totalorder %s13, 3
    %p201 = pnand %p199, %p200
    %p202 = pneg %p201
    // Predicated region
    $region9: #{pinn_forward_batched.1} parent=5 // pred_check
      _
    $region10: #{pinn_forward_batched.1} parent=5 // pred_check_branch
      %204 = sbr.rel (%p201) target = $region12
    $region11: #{pinn_forward_batched.1} parent=5 // pred_region
      %s205 = ssub.s32 %s13, 1
      // Predicated region
      $region13: #{pinn_forward_batched.1} parent=11 // pred_check
        %p206 = pneg %p60
      $region14: #{pinn_forward_batched.1} parent=11 // pred_check_branch
        %208 = sbr.rel (%p206) target = $region16
      $region15: #{pinn_forward_batched.1} parent=11 // pred_region
        _
      $region16: #{pinn_forward_batched.1} parent=11 // pred_fallthru
        _
      // Predicated region
      $region17: #{pinn_forward_batched.1} parent=11 // pred_check
        %p209 = pneg %p81
      $region18: #{pinn_forward_batched.1} parent=11 // pred_check_branch
        %211 = sbr.rel (%p209) target = $region20
      $region19: #{pinn_forward_batched.1} parent=11 // pred_region
        _
      $region20: #{pinn_forward_batched.1} parent=11 // pred_fallthru
        _
      // Predicated region
      $region21: #{pinn_forward_batched.1} parent=11 // pred_check
        %p212 = pneg %p102
      $region22: #{pinn_forward_batched.1} parent=11 // pred_check_branch
        %214 = sbr.rel (%p212) target = $region24
      $region23: #{pinn_forward_batched.1} parent=11 // pred_region
        _
      $region24: #{pinn_forward_batched.1} parent=11 // pred_fallthru
        _
      // Predicated region
      $region25: #{pinn_forward_batched.1} parent=11 // pred_check
        %p215 = pneg %p123
      $region26: #{pinn_forward_batched.1} parent=11 // pred_check_branch
        %217 = sbr.rel (%p215) target = $region28
      $region27: #{pinn_forward_batched.1} parent=11 // pred_region
        _
      $region28: #{pinn_forward_batched.1} parent=11 // pred_fallthru
        _
      // Predicated region
      $region29: #{pinn_forward_batched.1} parent=11 // pred_check
        %p218 = pneg %p144
      $region30: #{pinn_forward_batched.1} parent=11 // pred_check_branch
        %220 = sbr.rel (%p218) target = $region32
      $region31: #{pinn_forward_batched.1} parent=11 // pred_region
        _
      $region32: #{pinn_forward_batched.1} parent=11 // pred_fallthru
        _
      // Predicated region
      $region33: #{pinn_forward_batched.1} parent=11 // pred_check
        %p221 = pneg %p165
      $region34: #{pinn_forward_batched.1} parent=11 // pred_check_branch
        %223 = sbr.rel (%p221) target = $region36
      $region35: #{pinn_forward_batched.1} parent=11 // pred_region
        _
      $region36: #{pinn_forward_batched.1} parent=11 // pred_fallthru
        _
    $region12: #{pinn_forward_batched.1} parent=5 // pred_fallthru
      _
    %p224 = scmp.lt.s32.totalorder %s13, 2
    // Predicated region
    $region37: #{pinn_forward_batched.1} parent=5 // pred_check
      %p225 = pneg %p224
    $region38: #{pinn_forward_batched.1} parent=5 // pred_check_branch
      %227 = sbr.rel (%p225) target = $region40
    $region39: #{pinn_forward_batched.1} parent=5 // pred_region
      // Predicated region
      $region41: #{pinn_forward_batched.1} parent=39 // pred_check
        %p228 = pneg %p33
      $region42: #{pinn_forward_batched.1} parent=39 // pred_check_branch
        %230 = sbr.rel (%p228) target = $region44
      $region43: #{pinn_forward_batched.1} parent=39 // pred_region
        %p231 = scmp.lt.s32.totalorder %s13, 1
        %s232 = scalar_select %p231, %s13, 1
        %s233 = smul.addr %s232, 2
        %s234 = scalar_lea.vmem %s0, %s233
      $region44: #{pinn_forward_batched.1} parent=39 // pred_fallthru
        _
    $region40: #{pinn_forward_batched.1} parent=5 // pred_fallthru
      _
    %p235 = scmp.le.s32.totalorder 1, %s13
    %p236 = scmp.lt.s32.totalorder %s13, 3
    %p237 = pnand %p235, %p236
    %p238 = pneg %p237
    // Predicated region
    $region45: #{pinn_forward_batched.1} parent=5 // pred_check
      _
    $region46: #{pinn_forward_batched.1} parent=5 // pred_check_branch
      %240 = sbr.rel (%p237) target = $region48
    $region47: #{pinn_forward_batched.1} parent=5 // pred_region
      %s241 = ssub.s32 %s13, 1
      %p242 = scmp.lt.s32.totalorder %s18, 1
      %s243 = scalar_select %p242, %s18, 1
      %s244 = smul.addr %s243, 2
      %s245 = scalar_lea.vmem %s0, %s244
      %p246 = pneg %p39
      %p247 = pneg %p36
      %p248 = pneg %p60
      %p249 = pneg %p57
      %p250 = pneg %p81
      %p251 = pneg %p78
      %p252 = pneg %p102
      %p253 = pneg %p99
      %p254 = pneg %p123
      %p255 = pneg %p120
      %p256 = pneg %p144
      %p257 = pneg %p141
      %p258 = pneg %p165
      %p259 = pneg %p162
      %p260 = pneg %p191
      %p261 = pneg %p188
      %p262 = scmp.lt.s32.totalorder %s18, 1
      %s263 = scalar_select %p262, %s18, 1
      %s264 = smul.addr %s263, 4
      %s265 = scalar_lea.vmem %s7, %s264
      %p266 = scmp.lt.s32.totalorder %s18, 1
      %s267 = scalar_select %p266, %s18, 1
      %s268 = smul.addr %s267, 2
      %s269 = scalar_lea.vmem %s0, %s268
      %p270 = scmp.lt.s32.totalorder %s18, 1
      %s271 = scalar_select %p270, %s18, 1
      %s272 = smul.addr %s271, 4
      %s273 = scalar_lea.vmem %s7, %s272
      %v274 = vld [vmem:[%s269] sm:$0x3]
      %v275 = vld [vmem:[%s1] sm:$0xff]
      %v276 = vld [vmem:[%s1 + $0x8] sm:$0xff]
      %v277 = vld [vmem:[%s1 + $0x10] sm:$0xff]
      %v278 = vld [vmem:[%s1 + $0x18] sm:$0xff]
      %v279 = vld [vmem:[%s2] sm:$0xff]
      %v280 = vld [vmem:[%s2 + $0x8] sm:$0xff]
      %v281 = vld [vmem:[%s2 + $0x10] sm:$0xff]
      %v282 = vld [vmem:[%s2 + $0x18] sm:$0xff]
      %284 = vset.pattern.permute.xlu0 0
      %285 = vperm.xlu0 %284, %v279
      %v286 = vpop.permute.xlu0 %285
      %289 = vset.pattern.permute.xlu0 0
      %290 = vperm.xlu0 %289, %v280
      %v291 = vpop.permute.xlu0 %290
      %294 = vset.pattern.permute.xlu0 0
      %295 = vperm.xlu0 %294, %v281
      %v296 = vpop.permute.xlu0 %295
      %299 = vset.pattern.permute.xlu0 0
      %300 = vperm.xlu0 %299, %v282
      %v301 = vpop.permute.xlu0 %300
      %vm303 = vcmask 15360
      %v305 = vsel %vm303, %v275, 0
      %v308 = vsel %vm303, %v276, 0
      %v311 = vsel %vm303, %v277, 0
      %v314 = vsel %vm303, %v278, 0
      %vm316 = vcmask 1041408
      %v318 = vsel %vm316, %v274, 0
      %320 = vmatpush.msra.mxu0 0.0
      %321 = vmatpush.msra.mxu0 0.0
      %322 = vmatpush.msra.mxu0 0.0
      %323 = vmatpush.msra.mxu0 0.0
      %324 = vmatpush.msra.mxu0 0.0
      %325 = vmatpush.msra.mxu0 0.0
      %326 = vmatpush.msra.mxu0 0.0
      %327 = vmatpush.msra.mxu0 0.0
      %328 = vmatpush.msra.mxu0 0.0
      %329 = vmatpush.msra.mxu0 0.0
      %330 = vmatpush.msra.mxu0 0.0
      %331 = vmatpush.msra.mxu0 0.0
      %332 = vmatpush.msra.mxu0 0.0
      %333 = vmatpush.msra.mxu0 0.0
      %334 = vmatpush.msra.mxu0 0.0
      %335 = vmatpush.msra.mxu0 %v318
      %336 = vmatmul.f32.gmra.mxu0 %v305
      %v337 = vpop.f32.mrf.mxu0
      %v338 = vadd.f32 %v286, %v337
      %339 = vmatmul.f32.gmra.mxu0 %v308
      %v340 = vpop.f32.mrf.mxu0
      %v341 = vadd.f32 %v291, %v340
      %342 = vmatmul.f32.gmra.mxu0 %v311
      %v343 = vpop.f32.mrf.mxu0
      %v344 = vadd.f32 %v296, %v343
      %345 = vmatmul.f32.gmra.mxu0 %v314
      %v346 = vpop.f32.mrf.mxu0
      %v347 = vadd.f32 %v301, %v346
      %348 = vdwg.mxu0
      %v349 = vmul.f32 %v338, 0.70710677
      %v350 = vmul.f32 %v341, 0.70710677
      %v351 = vmul.f32 %v344, 0.70710677
      %v352 = vmul.f32 %v347, 0.70710677
      %vm353 = vcmp.ge.f32.partialorder %v349, 0.0
      %vm354 = vcmp.ge.f32.partialorder %v350, 0.0
      %vm355 = vcmp.ge.f32.partialorder %v351, 0.0
      %vm356 = vcmp.ge.f32.partialorder %v352, 0.0
      %v357 = vsel %vm353, 1.0, -1.0
      %v358 = vsel %vm354, 1.0, -1.0
      %v359 = vsel %vm355, 1.0, -1.0
      %v360 = vsel %vm356, 1.0, -1.0
      %v361 = vand.u32 2147483647, %v349
      %v362 = vand.u32 2147483647, %v350
      %v363 = vand.u32 2147483647, %v351
      %v364 = vand.u32 2147483647, %v352
      %v365 = vmul.f32 %v361, 0.3275911
      %v366 = vmul.f32 %v362, 0.3275911
      %v367 = vmul.f32 %v363, 0.3275911
      %v368 = vmul.f32 %v364, 0.3275911
      %v369 = vadd.f32 %v365, 1.0
      %v370 = vadd.f32 %v366, 1.0
      %v371 = vadd.f32 %v367, 1.0
      %v372 = vadd.f32 %v368, 1.0
      %v373 = vrcp.pop %v369
      %v374 = vrcp.pop %v370
      %v375 = vrcp.pop %v371
      %v376 = vrcp.pop %v372
      %v377 = vmul.f32 %v373, 1.0614054
      %v378 = vmul.f32 %v374, 1.0614054
      %v379 = vmul.f32 %v375, 1.0614054
      %v380 = vmul.f32 %v376, 1.0614054
      %v381 = vadd.f32 %v377, -1.4531521
      %v382 = vadd.f32 %v378, -1.4531521
      %v383 = vadd.f32 %v379, -1.4531521
      %v384 = vadd.f32 %v380, -1.4531521
      %v385 = vmul.f32 %v381, %v373
      %v386 = vmul.f32 %v382, %v374
      %v387 = vmul.f32 %v383, %v375
      %v388 = vmul.f32 %v384, %v376
      %v389 = vadd.f32 %v385, 1.4214138
      %v390 = vadd.f32 %v386, 1.4214138
      %v391 = vadd.f32 %v387, 1.4214138
      %v392 = vadd.f32 %v388, 1.4214138
      %v393 = vmul.f32 %v389, %v373
      %v394 = vmul.f32 %v390, %v374
      %v395 = vmul.f32 %v391, %v375
      %v396 = vmul.f32 %v392, %v376
      %v397 = vadd.f32 %v393, -0.28449672
      %v398 = vadd.f32 %v394, -0.28449672
      %v399 = vadd.f32 %v395, -0.28449672
      %v400 = vadd.f32 %v396, -0.28449672
      %v401 = vmul.f32 %v397, %v373
      %v402 = vmul.f32 %v398, %v374
      %v403 = vmul.f32 %v399, %v375
      %v404 = vmul.f32 %v400, %v376
      %v405 = vadd.f32 %v401, 0.2548296
      %v406 = vadd.f32 %v402, 0.2548296
      %v407 = vadd.f32 %v403, 0.2548296
      %v408 = vadd.f32 %v404, 0.2548296
      %v409 = vmul.f32 %v405, %v373
      %v410 = vmul.f32 %v406, %v374
      %v411 = vmul.f32 %v407, %v375
      %v412 = vmul.f32 %v408, %v376
      %v413 = vsub.f32 0.0, %v361
      %v414 = vsub.f32 0.0, %v362
      %v415 = vsub.f32 0.0, %v363
      %v416 = vsub.f32 0.0, %v364
      %v417 = vmul.f32 %v413, %v361
      %v418 = vmul.f32 %v414, %v362
      %v419 = vmul.f32 %v415, %v363
      %v420 = vmul.f32 %v416, %v364
      %v421 = vmul.f32 %v417, 1.442695
      %v422 = vpow.pop %v421
      %v423 = vmul.f32 %v418, 1.442695
      %v424 = vpow.pop %v423
      %v425 = vmul.f32 %v419, 1.442695
      %v426 = vpow.pop %v425
      %v427 = vmul.f32 %v420, 1.442695
      %v428 = vpow.pop %v427
      %v429 = vmul.f32 %v409, %v422
      %v430 = vmul.f32 %v410, %v424
      %v431 = vmul.f32 %v411, %v426
      %v432 = vmul.f32 %v412, %v428
      %v433 = vsub.f32 1.0, %v429
      %v434 = vsub.f32 1.0, %v430
      %v435 = vsub.f32 1.0, %v431
      %v436 = vsub.f32 1.0, %v432
      %v437 = vmul.f32 %v357, %v433
      %v438 = vmul.f32 %v358, %v434
      %v439 = vmul.f32 %v359, %v435
      %v440 = vmul.f32 %v360, %v436
      %v441 = vadd.f32 %v437, 1.0
      %v442 = vadd.f32 %v438, 1.0
      %v443 = vadd.f32 %v439, 1.0
      %v444 = vadd.f32 %v440, 1.0
      %v445 = vmul.f32 %v441, 0.5
      %v446 = vmul.f32 %v442, 0.5
      %v447 = vmul.f32 %v443, 0.5
      %v448 = vmul.f32 %v444, 0.5
      %v449 = vmul.f32 %v338, -0.5
      %v450 = vmul.f32 %v341, -0.5
      %v451 = vmul.f32 %v344, -0.5
      %v452 = vmul.f32 %v347, -0.5
      %v453 = vmul.f32 %v449, %v338
      %v454 = vmul.f32 %v450, %v341
      %v455 = vmul.f32 %v451, %v344
      %v456 = vmul.f32 %v452, %v347
      %v457 = vmul.f32 %v453, 1.442695
      %v458 = vpow.pop %v457
      %v459 = vmul.f32 %v454, 1.442695
      %v460 = vpow.pop %v459
      %v461 = vmul.f32 %v455, 1.442695
      %v462 = vpow.pop %v461
      %v463 = vmul.f32 %v456, 1.442695
      %v464 = vpow.pop %v463
      %v465 = vmul.f32 %v458, 0.3989423
      %v466 = vmul.f32 %v460, 0.3989423
      %v467 = vmul.f32 %v462, 0.3989423
      %v468 = vmul.f32 %v464, 0.3989423
      %v469 = vmul.f32 %v338, %v465
      %v470 = vmul.f32 %v341, %v466
      %v471 = vmul.f32 %v344, %v467
      %v472 = vmul.f32 %v347, %v468
      %v473 = vadd.f32 %v445, %v469
      %v474 = vadd.f32 %v446, %v470
      %v475 = vadd.f32 %v447, %v471
      %v476 = vadd.f32 %v448, %v472
      %v477 = vmul.f32 %v338, %v445
      %v478 = vmul.f32 %v341, %v446
      %v479 = vmul.f32 %v344, %v447
      %v480 = vmul.f32 %v347, %v448
      %481 = vset.pattern.permute.xlu0 0
      %482 = vperm.xlu0 %481, %v275
      %v483 = vpop.permute.xlu0 %482
      %485 = vset.pattern.permute.xlu0 0
      %486 = vperm.xlu0 %485, %v276
      %v487 = vpop.permute.xlu0 %486
      %489 = vset.pattern.permute.xlu0 0
      %490 = vperm.xlu0 %489, %v277
      %v491 = vpop.permute.xlu0 %490
      %493 = vset.pattern.permute.xlu0 0
      %494 = vperm.xlu0 %493, %v278
      %v495 = vpop.permute.xlu0 %494
      %v497 = vmul.f32 %v473, %v483
      %v498 = vmul.f32 %v474, %v487
      %v499 = vmul.f32 %v475, %v491
      %v500 = vmul.f32 %v476, %v495
      %501 = vset.pattern.permute.xlu0 1
      %502 = vperm.xlu0 %501, %v275
      %v503 = vpop.permute.xlu0 %502
      %505 = vset.pattern.permute.xlu0 1
      %506 = vperm.xlu0 %505, %v276
      %v507 = vpop.permute.xlu0 %506
      %509 = vset.pattern.permute.xlu0 1
      %510 = vperm.xlu0 %509, %v277
      %v511 = vpop.permute.xlu0 %510
      %513 = vset.pattern.permute.xlu0 1
      %514 = vperm.xlu0 %513, %v278
      %v515 = vpop.permute.xlu0 %514
      %v517 = vmul.f32 %v473, %v503
      %v518 = vmul.f32 %v474, %v507
      %v519 = vmul.f32 %v475, %v511
      %v520 = vmul.f32 %v476, %v515
      %v521 = vld [vmem:[%s3] sm:$0xff]
      %v522 = vld [vmem:[%s3 + $0x8] sm:$0xff]
      %v523 = vld [vmem:[%s3 + $0x10] sm:$0xff]
      %v524 = vld [vmem:[%s3 + $0x18] sm:$0xff]
      %vm525 = vcmask 261120
      %v527 = vsel %vm525, %v521, 0
      %v530 = vsel %vm525, %v522, 0
      %v533 = vsel %vm525, %v523, 0
      %v536 = vsel %vm525, %v524, 0
      %538 = vmatpush.msra.mxu0 0.0
      %539 = vmatpush.msra.mxu0 0.0
      %540 = vmatpush.msra.mxu0 0.0
      %541 = vmatpush.msra.mxu0 0.0
      %542 = vmatpush.msra.mxu0 0.0
      %543 = vmatpush.msra.mxu0 0.0
      %544 = vmatpush.msra.mxu0 0.0
      %545 = vmatpush.msra.mxu0 0.0
      %546 = vmatpush.msra.mxu0 0.0
      %547 = vmatpush.msra.mxu0 0.0
      %548 = vmatpush.msra.mxu0 0.0
      %549 = vmatpush.msra.mxu0 0.0
      %550 = vmatpush.msra.mxu0 %v480
      %551 = vmatpush.msra.mxu0 %v479
      %552 = vmatpush.msra.mxu0 %v478
      %553 = vmatpush.msra.mxu0 %v477
      %554 = vmatmul.f32.gmra.mxu0 %v527
      %v555 = vpop.f32.mrf.mxu0
      %v556 = vadd.f32 0.0, %v555
      %557 = vmatmul.f32.gmra.mxu0 %v530
      %v558 = vpop.f32.mrf.mxu0
      %v559 = vadd.f32 0.0, %v558
      %560 = vmatmul.f32.gmra.mxu0 %v533
      %v561 = vpop.f32.mrf.mxu0
      %v562 = vadd.f32 0.0, %v561
      %563 = vmatmul.f32.gmra.mxu0 %v536
      %v564 = vpop.f32.mrf.mxu0
      %v565 = vadd.f32 0.0, %v564
      %566 = vdwg.mxu0
      %567 = vmatpush.msra.mxu0 0.0
      %568 = vmatpush.msra.mxu0 0.0
      %569 = vmatpush.msra.mxu0 0.0
      %570 = vmatpush.msra.mxu0 0.0
      %571 = vmatpush.msra.mxu0 0.0
      %572 = vmatpush.msra.mxu0 0.0
      %573 = vmatpush.msra.mxu0 0.0
      %574 = vmatpush.msra.mxu0 0.0
      %575 = vmatpush.msra.mxu0 0.0
      %576 = vmatpush.msra.mxu0 0.0
      %577 = vmatpush.msra.mxu0 0.0
      %578 = vmatpush.msra.mxu0 0.0
      %579 = vmatpush.msra.mxu0 %v500
      %580 = vmatpush.msra.mxu0 %v499
      %581 = vmatpush.msra.mxu0 %v498
      %582 = vmatpush.msra.mxu0 %v497
      %583 = vmatmul.f32.gmra.mxu0 %v527
      %v584 = vpop.f32.mrf.mxu0
      %v585 = vadd.f32 0.0, %v584
      %586 = vmatmul.f32.gmra.mxu0 %v530
      %v587 = vpop.f32.mrf.mxu0
      %v588 = vadd.f32 0.0, %v587
      %589 = vmatmul.f32.gmra.mxu0 %v533
      %v590 = vpop.f32.mrf.mxu0
      %v591 = vadd.f32 0.0, %v590
      %592 = vmatmul.f32.gmra.mxu0 %v536
      %v593 = vpop.f32.mrf.mxu0
      %v594 = vadd.f32 0.0, %v593
      %595 = vdwg.mxu0
      %596 = vmatpush.msra.mxu0 0.0
      %597 = vmatpush.msra.mxu0 0.0
      %598 = vmatpush.msra.mxu0 0.0
      %599 = vmatpush.msra.mxu0 0.0
      %600 = vmatpush.msra.mxu0 0.0
      %601 = vmatpush.msra.mxu0 0.0
      %602 = vmatpush.msra.mxu0 0.0
      %603 = vmatpush.msra.mxu0 0.0
      %604 = vmatpush.msra.mxu0 0.0
      %605 = vmatpush.msra.mxu0 0.0
      %606 = vmatpush.msra.mxu0 0.0
      %607 = vmatpush.msra.mxu0 0.0
      %608 = vmatpush.msra.mxu0 %v520
      %609 = vmatpush.msra.mxu0 %v519
      %610 = vmatpush.msra.mxu0 %v518
      %611 = vmatpush.msra.mxu0 %v517
      %612 = vmatmul.f32.gmra.mxu0 %v527
      %v613 = vpop.f32.mrf.mxu0
      %v614 = vadd.f32 0.0, %v613
      %615 = vmatmul.f32.gmra.mxu0 %v530
      %v616 = vpop.f32.mrf.mxu0
      %v617 = vadd.f32 0.0, %v616
      %618 = vmatmul.f32.gmra.mxu0 %v533
      %v619 = vpop.f32.mrf.mxu0
      %v620 = vadd.f32 0.0, %v619
      %621 = vmatmul.f32.gmra.mxu0 %v536
      %v622 = vpop.f32.mrf.mxu0
      %v623 = vadd.f32 0.0, %v622
      %624 = vdwg.mxu0
      %v625 = vld [vmem:[%s4] sm:$0xff]
      %v626 = vld [vmem:[%s4 + $0x8] sm:$0xff]
      %v627 = vld [vmem:[%s4 + $0x10] sm:$0xff]
      %v628 = vld [vmem:[%s4 + $0x18] sm:$0xff]
      %630 = vset.pattern.permute.xlu0 0
      %631 = vperm.xlu0 %630, %v625
      %v632 = vpop.permute.xlu0 %631
      %635 = vset.pattern.permute.xlu0 0
      %636 = vperm.xlu0 %635, %v626
      %v637 = vpop.permute.xlu0 %636
      %640 = vset.pattern.permute.xlu0 0
      %641 = vperm.xlu0 %640, %v627
      %v642 = vpop.permute.xlu0 %641
      %645 = vset.pattern.permute.xlu0 0
      %646 = vperm.xlu0 %645, %v628
      %v647 = vpop.permute.xlu0 %646
      %v649 = vadd.f32 %v556, %v632
      %v650 = vadd.f32 %v559, %v637
      %v651 = vadd.f32 %v562, %v642
      %v652 = vadd.f32 %v565, %v647
      %v653 = vmul.f32 %v649, 0.70710677
      %v654 = vmul.f32 %v650, 0.70710677
      %v655 = vmul.f32 %v651, 0.70710677
      %v656 = vmul.f32 %v652, 0.70710677
      %vm657 = vcmp.ge.f32.partialorder %v653, 0.0
      %vm658 = vcmp.ge.f32.partialorder %v654, 0.0
      %vm659 = vcmp.ge.f32.partialorder %v655, 0.0
      %vm660 = vcmp.ge.f32.partialorder %v656, 0.0
      %v661 = vsel %vm657, 1.0, -1.0
      %v662 = vsel %vm658, 1.0, -1.0
      %v663 = vsel %vm659, 1.0, -1.0
      %v664 = vsel %vm660, 1.0, -1.0
      %v665 = vand.u32 2147483647, %v653
      %v666 = vand.u32 2147483647, %v654
      %v667 = vand.u32 2147483647, %v655
      %v668 = vand.u32 2147483647, %v656
      %v669 = vmul.f32 %v665, 0.3275911
      %v670 = vmul.f32 %v666, 0.3275911
      %v671 = vmul.f32 %v667, 0.3275911
      %v672 = vmul.f32 %v668, 0.3275911
      %v673 = vadd.f32 %v669, 1.0
      %v674 = vadd.f32 %v670, 1.0
      %v675 = vadd.f32 %v671, 1.0
      %v676 = vadd.f32 %v672, 1.0
      %v677 = vrcp.pop %v673
      %v678 = vrcp.pop %v674
      %v679 = vrcp.pop %v675
      %v680 = vrcp.pop %v676
      %v681 = vmul.f32 %v677, 1.0614054
      %v682 = vmul.f32 %v678, 1.0614054
      %v683 = vmul.f32 %v679, 1.0614054
      %v684 = vmul.f32 %v680, 1.0614054
      %v685 = vadd.f32 %v681, -1.4531521
      %v686 = vadd.f32 %v682, -1.4531521
      %v687 = vadd.f32 %v683, -1.4531521
      %v688 = vadd.f32 %v684, -1.4531521
      %v689 = vmul.f32 %v685, %v677
      %v690 = vmul.f32 %v686, %v678
      %v691 = vmul.f32 %v687, %v679
      %v692 = vmul.f32 %v688, %v680
      %v693 = vadd.f32 %v689, 1.4214138
      %v694 = vadd.f32 %v690, 1.4214138
      %v695 = vadd.f32 %v691, 1.4214138
      %v696 = vadd.f32 %v692, 1.4214138
      %v697 = vmul.f32 %v693, %v677
      %v698 = vmul.f32 %v694, %v678
      %v699 = vmul.f32 %v695, %v679
      %v700 = vmul.f32 %v696, %v680
      %v701 = vadd.f32 %v697, -0.28449672
      %v702 = vadd.f32 %v698, -0.28449672
      %v703 = vadd.f32 %v699, -0.28449672
      %v704 = vadd.f32 %v700, -0.28449672
      %v705 = vmul.f32 %v701, %v677
      %v706 = vmul.f32 %v702, %v678
      %v707 = vmul.f32 %v703, %v679
      %v708 = vmul.f32 %v704, %v680
      %v709 = vadd.f32 %v705, 0.2548296
      %v710 = vadd.f32 %v706, 0.2548296
      %v711 = vadd.f32 %v707, 0.2548296
      %v712 = vadd.f32 %v708, 0.2548296
      %v713 = vmul.f32 %v709, %v677
      %v714 = vmul.f32 %v710, %v678
      %v715 = vmul.f32 %v711, %v679
      %v716 = vmul.f32 %v712, %v680
      %v717 = vsub.f32 0.0, %v665
      %v718 = vsub.f32 0.0, %v666
      %v719 = vsub.f32 0.0, %v667
      %v720 = vsub.f32 0.0, %v668
      %v721 = vmul.f32 %v717, %v665
      %v722 = vmul.f32 %v718, %v666
      %v723 = vmul.f32 %v719, %v667
      %v724 = vmul.f32 %v720, %v668
      %v725 = vmul.f32 %v721, 1.442695
      %v726 = vpow.pop %v725
      %v727 = vmul.f32 %v722, 1.442695
      %v728 = vpow.pop %v727
      %v729 = vmul.f32 %v723, 1.442695
      %v730 = vpow.pop %v729
      %v731 = vmul.f32 %v724, 1.442695
      %v732 = vpow.pop %v731
      %v733 = vmul.f32 %v713, %v726
      %v734 = vmul.f32 %v714, %v728
      %v735 = vmul.f32 %v715, %v730
      %v736 = vmul.f32 %v716, %v732
      %v737 = vsub.f32 1.0, %v733
      %v738 = vsub.f32 1.0, %v734
      %v739 = vsub.f32 1.0, %v735
      %v740 = vsub.f32 1.0, %v736
      %v741 = vmul.f32 %v661, %v737
      %v742 = vmul.f32 %v662, %v738
      %v743 = vmul.f32 %v663, %v739
      %v744 = vmul.f32 %v664, %v740
      %v745 = vadd.f32 %v741, 1.0
      %v746 = vadd.f32 %v742, 1.0
      %v747 = vadd.f32 %v743, 1.0
      %v748 = vadd.f32 %v744, 1.0
      %v749 = vmul.f32 %v745, 0.5
      %v750 = vmul.f32 %v746, 0.5
      %v751 = vmul.f32 %v747, 0.5
      %v752 = vmul.f32 %v748, 0.5
      %v753 = vmul.f32 %v649, -0.5
      %v754 = vmul.f32 %v650, -0.5
      %v755 = vmul.f32 %v651, -0.5
      %v756 = vmul.f32 %v652, -0.5
      %v757 = vmul.f32 %v753, %v649
      %v758 = vmul.f32 %v754, %v650
      %v759 = vmul.f32 %v755, %v651
      %v760 = vmul.f32 %v756, %v652
      %v761 = vmul.f32 %v757, 1.442695
      %v762 = vpow.pop %v761
      %v763 = vmul.f32 %v758, 1.442695
      %v764 = vpow.pop %v763
      %v765 = vmul.f32 %v759, 1.442695
      %v766 = vpow.pop %v765
      %v767 = vmul.f32 %v760, 1.442695
      %v768 = vpow.pop %v767
      %v769 = vmul.f32 %v762, 0.3989423
      %v770 = vmul.f32 %v764, 0.3989423
      %v771 = vmul.f32 %v766, 0.3989423
      %v772 = vmul.f32 %v768, 0.3989423
      %v773 = vmul.f32 %v649, %v769
      %v774 = vmul.f32 %v650, %v770
      %v775 = vmul.f32 %v651, %v771
      %v776 = vmul.f32 %v652, %v772
      %v777 = vadd.f32 %v749, %v773
      %v778 = vadd.f32 %v750, %v774
      %v779 = vadd.f32 %v751, %v775
      %v780 = vadd.f32 %v752, %v776
      %v781 = vmul.f32 %v649, %v749
      %v782 = vmul.f32 %v650, %v750
      %v783 = vmul.f32 %v651, %v751
      %v784 = vmul.f32 %v652, %v752
      %v785 = vmul.f32 %v777, %v585
      %v786 = vmul.f32 %v778, %v588
      %v787 = vmul.f32 %v779, %v591
      %v788 = vmul.f32 %v780, %v594
      %v789 = vmul.f32 %v777, %v614
      %v790 = vmul.f32 %v778, %v617
      %v791 = vmul.f32 %v779, %v620
      %v792 = vmul.f32 %v780, %v623
      %s793 = scalar_lea.vmem %s3, 32
      %v794 = vld [vmem:[%s793] sm:$0xff]
      %v795 = vld [vmem:[%s793 + $0x8] sm:$0xff]
      %v796 = vld [vmem:[%s793 + $0x10] sm:$0xff]
      %v797 = vld [vmem:[%s793 + $0x18] sm:$0xff]
      %v799 = vsel %vm525, %v794, 0
      %v802 = vsel %vm525, %v795, 0
      %v805 = vsel %vm525, %v796, 0
      %v808 = vsel %vm525, %v797, 0
      %810 = vmatpush.msra.mxu0 0.0
      %811 = vmatpush.msra.mxu0 0.0
      %812 = vmatpush.msra.mxu0 0.0
      %813 = vmatpush.msra.mxu0 0.0
      %814 = vmatpush.msra.mxu0 0.0
      %815 = vmatpush.msra.mxu0 0.0
      %816 = vmatpush.msra.mxu0 0.0
      %817 = vmatpush.msra.mxu0 0.0
      %818 = vmatpush.msra.mxu0 0.0
      %819 = vmatpush.msra.mxu0 0.0
      %820 = vmatpush.msra.mxu0 0.0
      %821 = vmatpush.msra.mxu0 0.0
      %822 = vmatpush.msra.mxu0 %v784
      %823 = vmatpush.msra.mxu0 %v783
      %824 = vmatpush.msra.mxu0 %v782
      %825 = vmatpush.msra.mxu0 %v781
      %826 = vmatmul.f32.gmra.mxu0 %v799
      %v827 = vpop.f32.mrf.mxu0
      %v828 = vadd.f32 0.0, %v827
      %829 = vmatmul.f32.gmra.mxu0 %v802
      %v830 = vpop.f32.mrf.mxu0
      %v831 = vadd.f32 0.0, %v830
      %832 = vmatmul.f32.gmra.mxu0 %v805
      %v833 = vpop.f32.mrf.mxu0
      %v834 = vadd.f32 0.0, %v833
      %835 = vmatmul.f32.gmra.mxu0 %v808
      %v836 = vpop.f32.mrf.mxu0
      %v837 = vadd.f32 0.0, %v836
      %838 = vdwg.mxu0
      %839 = vmatpush.msra.mxu0 0.0
      %840 = vmatpush.msra.mxu0 0.0
      %841 = vmatpush.msra.mxu0 0.0
      %842 = vmatpush.msra.mxu0 0.0
      %843 = vmatpush.msra.mxu0 0.0
      %844 = vmatpush.msra.mxu0 0.0
      %845 = vmatpush.msra.mxu0 0.0
      %846 = vmatpush.msra.mxu0 0.0
      %847 = vmatpush.msra.mxu0 0.0
      %848 = vmatpush.msra.mxu0 0.0
      %849 = vmatpush.msra.mxu0 0.0
      %850 = vmatpush.msra.mxu0 0.0
      %851 = vmatpush.msra.mxu0 %v788
      %852 = vmatpush.msra.mxu0 %v787
      %853 = vmatpush.msra.mxu0 %v786
      %854 = vmatpush.msra.mxu0 %v785
      %855 = vmatmul.f32.gmra.mxu0 %v799
      %v856 = vpop.f32.mrf.mxu0
      %v857 = vadd.f32 0.0, %v856
      %858 = vmatmul.f32.gmra.mxu0 %v802
      %v859 = vpop.f32.mrf.mxu0
      %v860 = vadd.f32 0.0, %v859
      %861 = vmatmul.f32.gmra.mxu0 %v805
      %v862 = vpop.f32.mrf.mxu0
      %v863 = vadd.f32 0.0, %v862
      %864 = vmatmul.f32.gmra.mxu0 %v808
      %v865 = vpop.f32.mrf.mxu0
      %v866 = vadd.f32 0.0, %v865
      %867 = vdwg.mxu0
      %868 = vmatpush.msra.mxu0 0.0
      %869 = vmatpush.msra.mxu0 0.0
      %870 = vmatpush.msra.mxu0 0.0
      %871 = vmatpush.msra.mxu0 0.0
      %872 = vmatpush.msra.mxu0 0.0
      %873 = vmatpush.msra.mxu0 0.0
      %874 = vmatpush.msra.mxu0 0.0
      %875 = vmatpush.msra.mxu0 0.0
      %876 = vmatpush.msra.mxu0 0.0
      %877 = vmatpush.msra.mxu0 0.0
      %878 = vmatpush.msra.mxu0 0.0
      %879 = vmatpush.msra.mxu0 0.0
      %880 = vmatpush.msra.mxu0 %v792
      %881 = vmatpush.msra.mxu0 %v791
      %882 = vmatpush.msra.mxu0 %v790
      %883 = vmatpush.msra.mxu0 %v789
      %884 = vmatmul.f32.gmra.mxu0 %v799
      %v885 = vpop.f32.mrf.mxu0
      %v886 = vadd.f32 0.0, %v885
      %887 = vmatmul.f32.gmra.mxu0 %v802
      %v888 = vpop.f32.mrf.mxu0
      %v889 = vadd.f32 0.0, %v888
      %890 = vmatmul.f32.gmra.mxu0 %v805
      %v891 = vpop.f32.mrf.mxu0
      %v892 = vadd.f32 0.0, %v891
      %893 = vmatmul.f32.gmra.mxu0 %v808
      %v894 = vpop.f32.mrf.mxu0
      %v895 = vadd.f32 0.0, %v894
      %896 = vdwg.mxu0
      %s897 = scalar_lea.vmem %s4, 32
      %v898 = vld [vmem:[%s897] sm:$0xff]
      %v899 = vld [vmem:[%s897 + $0x8] sm:$0xff]
      %v900 = vld [vmem:[%s897 + $0x10] sm:$0xff]
      %v901 = vld [vmem:[%s897 + $0x18] sm:$0xff]
      %903 = vset.pattern.permute.xlu0 0
      %904 = vperm.xlu0 %903, %v898
      %v905 = vpop.permute.xlu0 %904
      %908 = vset.pattern.permute.xlu0 0
      %909 = vperm.xlu0 %908, %v899
      %v910 = vpop.permute.xlu0 %909
      %913 = vset.pattern.permute.xlu0 0
      %914 = vperm.xlu0 %913, %v900
      %v915 = vpop.permute.xlu0 %914
      %918 = vset.pattern.permute.xlu0 0
      %919 = vperm.xlu0 %918, %v901
      %v920 = vpop.permute.xlu0 %919
      %v922 = vadd.f32 %v828, %v905
      %v923 = vadd.f32 %v831, %v910
      %v924 = vadd.f32 %v834, %v915
      %v925 = vadd.f32 %v837, %v920
      %v926 = vmul.f32 %v922, 0.70710677
      %v927 = vmul.f32 %v923, 0.70710677
      %v928 = vmul.f32 %v924, 0.70710677
      %v929 = vmul.f32 %v925, 0.70710677
      %vm930 = vcmp.ge.f32.partialorder %v926, 0.0
      %vm931 = vcmp.ge.f32.partialorder %v927, 0.0
      %vm932 = vcmp.ge.f32.partialorder %v928, 0.0
      %vm933 = vcmp.ge.f32.partialorder %v929, 0.0
      %v934 = vsel %vm930, 1.0, -1.0
      %v935 = vsel %vm931, 1.0, -1.0
      %v936 = vsel %vm932, 1.0, -1.0
      %v937 = vsel %vm933, 1.0, -1.0
      %v938 = vand.u32 2147483647, %v926
      %v939 = vand.u32 2147483647, %v927
      %v940 = vand.u32 2147483647, %v928
      %v941 = vand.u32 2147483647, %v929
      %v942 = vmul.f32 %v938, 0.3275911
      %v943 = vmul.f32 %v939, 0.3275911
      %v944 = vmul.f32 %v940, 0.3275911
      %v945 = vmul.f32 %v941, 0.3275911
      %v946 = vadd.f32 %v942, 1.0
      %v947 = vadd.f32 %v943, 1.0
      %v948 = vadd.f32 %v944, 1.0
      %v949 = vadd.f32 %v945, 1.0
      %v950 = vrcp.pop %v946
      %v951 = vrcp.pop %v947
      %v952 = vrcp.pop %v948
      %v953 = vrcp.pop %v949
      %v954 = vmul.f32 %v950, 1.0614054
      %v955 = vmul.f32 %v951, 1.0614054
      %v956 = vmul.f32 %v952, 1.0614054
      %v957 = vmul.f32 %v953, 1.0614054
      %v958 = vadd.f32 %v954, -1.4531521
      %v959 = vadd.f32 %v955, -1.4531521
      %v960 = vadd.f32 %v956, -1.4531521
      %v961 = vadd.f32 %v957, -1.4531521
      %v962 = vmul.f32 %v958, %v950
      %v963 = vmul.f32 %v959, %v951
      %v964 = vmul.f32 %v960, %v952
      %v965 = vmul.f32 %v961, %v953
      %v966 = vadd.f32 %v962, 1.4214138
      %v967 = vadd.f32 %v963, 1.4214138
      %v968 = vadd.f32 %v964, 1.4214138
      %v969 = vadd.f32 %v965, 1.4214138
      %v970 = vmul.f32 %v966, %v950
      %v971 = vmul.f32 %v967, %v951
      %v972 = vmul.f32 %v968, %v952
      %v973 = vmul.f32 %v969, %v953
      %v974 = vadd.f32 %v970, -0.28449672
      %v975 = vadd.f32 %v971, -0.28449672
      %v976 = vadd.f32 %v972, -0.28449672
      %v977 = vadd.f32 %v973, -0.28449672
      %v978 = vmul.f32 %v974, %v950
      %v979 = vmul.f32 %v975, %v951
      %v980 = vmul.f32 %v976, %v952
      %v981 = vmul.f32 %v977, %v953
      %v982 = vadd.f32 %v978, 0.2548296
      %v983 = vadd.f32 %v979, 0.2548296
      %v984 = vadd.f32 %v980, 0.2548296
      %v985 = vadd.f32 %v981, 0.2548296
      %v986 = vmul.f32 %v982, %v950
      %v987 = vmul.f32 %v983, %v951
      %v988 = vmul.f32 %v984, %v952
      %v989 = vmul.f32 %v985, %v953
      %v990 = vsub.f32 0.0, %v938
      %v991 = vsub.f32 0.0, %v939
      %v992 = vsub.f32 0.0, %v940
      %v993 = vsub.f32 0.0, %v941
      %v994 = vmul.f32 %v990, %v938
      %v995 = vmul.f32 %v991, %v939
      %v996 = vmul.f32 %v992, %v940
      %v997 = vmul.f32 %v993, %v941
      %v998 = vmul.f32 %v994, 1.442695
      %v999 = vpow.pop %v998
      %v1000 = vmul.f32 %v995, 1.442695
      %v1001 = vpow.pop %v1000
      %v1002 = vmul.f32 %v996, 1.442695
      %v1003 = vpow.pop %v1002
      %v1004 = vmul.f32 %v997, 1.442695
      %v1005 = vpow.pop %v1004
      %v1006 = vmul.f32 %v986, %v999
      %v1007 = vmul.f32 %v987, %v1001
      %v1008 = vmul.f32 %v988, %v1003
      %v1009 = vmul.f32 %v989, %v1005
      %v1010 = vsub.f32 1.0, %v1006
      %v1011 = vsub.f32 1.0, %v1007
      %v1012 = vsub.f32 1.0, %v1008
      %v1013 = vsub.f32 1.0, %v1009
      %v1014 = vmul.f32 %v934, %v1010
      %v1015 = vmul.f32 %v935, %v1011
      %v1016 = vmul.f32 %v936, %v1012
      %v1017 = vmul.f32 %v937, %v1013
      %v1018 = vadd.f32 %v1014, 1.0
      %v1019 = vadd.f32 %v1015, 1.0
      %v1020 = vadd.f32 %v1016, 1.0
      %v1021 = vadd.f32 %v1017, 1.0
      %v1022 = vmul.f32 %v1018, 0.5
      %v1023 = vmul.f32 %v1019, 0.5
      %v1024 = vmul.f32 %v1020, 0.5
      %v1025 = vmul.f32 %v1021, 0.5
      %v1026 = vmul.f32 %v922, -0.5
      %v1027 = vmul.f32 %v923, -0.5
      %v1028 = vmul.f32 %v924, -0.5
      %v1029 = vmul.f32 %v925, -0.5
      %v1030 = vmul.f32 %v1026, %v922
      %v1031 = vmul.f32 %v1027, %v923
      %v1032 = vmul.f32 %v1028, %v924
      %v1033 = vmul.f32 %v1029, %v925
      %v1034 = vmul.f32 %v1030, 1.442695
      %v1035 = vpow.pop %v1034
      %v1036 = vmul.f32 %v1031, 1.442695
      %v1037 = vpow.pop %v1036
      %v1038 = vmul.f32 %v1032, 1.442695
      %v1039 = vpow.pop %v1038
      %v1040 = vmul.f32 %v1033, 1.442695
      %v1041 = vpow.pop %v1040
      %v1042 = vmul.f32 %v1035, 0.3989423
      %v1043 = vmul.f32 %v1037, 0.3989423
      %v1044 = vmul.f32 %v1039, 0.3989423
      %v1045 = vmul.f32 %v1041, 0.3989423
      %v1046 = vmul.f32 %v922, %v1042
      %v1047 = vmul.f32 %v923, %v1043
      %v1048 = vmul.f32 %v924, %v1044
      %v1049 = vmul.f32 %v925, %v1045
      %v1050 = vadd.f32 %v1022, %v1046
      %v1051 = vadd.f32 %v1023, %v1047
      %v1052 = vadd.f32 %v1024, %v1048
      %v1053 = vadd.f32 %v1025, %v1049
      %v1054 = vmul.f32 %v922, %v1022
      %v1055 = vmul.f32 %v923, %v1023
      %v1056 = vmul.f32 %v924, %v1024
      %v1057 = vmul.f32 %v925, %v1025
      %v1058 = vmul.f32 %v1050, %v857
      %v1059 = vmul.f32 %v1051, %v860
      %v1060 = vmul.f32 %v1052, %v863
      %v1061 = vmul.f32 %v1053, %v866
      %v1062 = vmul.f32 %v1050, %v886
      %v1063 = vmul.f32 %v1051, %v889
      %v1064 = vmul.f32 %v1052, %v892
      %v1065 = vmul.f32 %v1053, %v895
      %v1066 = vld [vmem:[%s5] sm:$0x3]
      %v1068 = vsel %vm525, %v1066, 0
      %1070 = vmatpush.msra.mxu0 0.0
      %1071 = vmatpush.msra.mxu0 0.0
      %1072 = vmatpush.msra.mxu0 0.0
      %1073 = vmatpush.msra.mxu0 0.0
      %1074 = vmatpush.msra.mxu0 0.0
      %1075 = vmatpush.msra.mxu0 0.0
      %1076 = vmatpush.msra.mxu0 0.0
      %1077 = vmatpush.msra.mxu0 0.0
      %1078 = vmatpush.msra.mxu0 0.0
      %1079 = vmatpush.msra.mxu0 0.0
      %1080 = vmatpush.msra.mxu0 0.0
      %1081 = vmatpush.msra.mxu0 0.0
      %1082 = vmatpush.msra.mxu0 %v1057
      %1083 = vmatpush.msra.mxu0 %v1056
      %1084 = vmatpush.msra.mxu0 %v1055
      %1085 = vmatpush.msra.mxu0 %v1054
      %1086 = vmatmul.f32.gmra.mxu0 %v1068
      %v1087 = vpop.f32.mrf.mxu0
      %v1088 = vadd.f32 0.0, %v1087
      %1089 = vdwg.mxu0
      %1090 = vmatpush.msra.mxu0 0.0
      %1091 = vmatpush.msra.mxu0 0.0
      %1092 = vmatpush.msra.mxu0 0.0
      %1093 = vmatpush.msra.mxu0 0.0
      %1094 = vmatpush.msra.mxu0 0.0
      %1095 = vmatpush.msra.mxu0 0.0
      %1096 = vmatpush.msra.mxu0 0.0
      %1097 = vmatpush.msra.mxu0 0.0
      %1098 = vmatpush.msra.mxu0 0.0
      %1099 = vmatpush.msra.mxu0 0.0
      %1100 = vmatpush.msra.mxu0 0.0
      %1101 = vmatpush.msra.mxu0 0.0
      %1102 = vmatpush.msra.mxu0 %v1061
      %1103 = vmatpush.msra.mxu0 %v1060
      %1104 = vmatpush.msra.mxu0 %v1059
      %1105 = vmatpush.msra.mxu0 %v1058
      %1106 = vmatmul.f32.gmra.mxu0 %v1068
      %v1107 = vpop.f32.mrf.mxu0
      %v1108 = vadd.f32 0.0, %v1107
      %1109 = vdwg.mxu0
      %1110 = vmatpush.msra.mxu0 0.0
      %1111 = vmatpush.msra.mxu0 0.0
      %1112 = vmatpush.msra.mxu0 0.0
      %1113 = vmatpush.msra.mxu0 0.0
      %1114 = vmatpush.msra.mxu0 0.0
      %1115 = vmatpush.msra.mxu0 0.0
      %1116 = vmatpush.msra.mxu0 0.0
      %1117 = vmatpush.msra.mxu0 0.0
      %1118 = vmatpush.msra.mxu0 0.0
      %1119 = vmatpush.msra.mxu0 0.0
      %1120 = vmatpush.msra.mxu0 0.0
      %1121 = vmatpush.msra.mxu0 0.0
      %1122 = vmatpush.msra.mxu0 %v1065
      %1123 = vmatpush.msra.mxu0 %v1064
      %1124 = vmatpush.msra.mxu0 %v1063
      %1125 = vmatpush.msra.mxu0 %v1062
      %1126 = vmatmul.f32.gmra.mxu0 %v1068
      %v1127 = vpop.f32.mrf.mxu0
      %v1128 = vadd.f32 0.0, %v1127
      %1129 = vdwg.mxu0
      %v1130 = vld [vmem:[%s6] sm:$0x3]
      %1132 = vset.pattern.permute.xlu0 0
      %1133 = vperm.xlu0 %1132, %v1130
      %v1134 = vpop.permute.xlu0 %1133
      %v1136 = vadd.f32 %v1088, %v1134
      %v1138 = vrot.slane %v1108, 6
      %v1141 = vrot.slane %v1128, 5
      %v1143 = vsel %vm316, %v1136, %v1138
      %vm1144 = vcmask 1042432
      %v1145 = vsel %vm1144, %v1143, %v1141
      %1146 = vst [vmem:[%s273] sm:$0xf] %v1145
      %p1147 = scmp.lt.s32.totalorder %s18, 1
      %s1148 = scalar_select %p1147, %s18, 1
      %s1149 = smul.addr %s1148, 4
      %s1150 = scalar_lea.vmem %s7, %s1149
      // Predicated region
      $region49: #{pinn_forward_batched.1} parent=47 // pred_check
        %p1151 = pneg %p188
      $region50: #{pinn_forward_batched.1} parent=47 // pred_check_branch
        %1153 = sbr.rel (%p1151) target = $region52
      $region51: #{pinn_forward_batched.1} parent=47 // pred_region
        _
      $region52: #{pinn_forward_batched.1} parent=47 // pred_fallthru
        _
    $region48: #{pinn_forward_batched.1} parent=5 // pred_fallthru
      _
    %p1154 = scmp.le.s32.totalorder 2, %s13
    // Predicated region
    $region53: #{pinn_forward_batched.1} parent=5 // pred_check
      %p1155 = pneg %p1154
    $region54: #{pinn_forward_batched.1} parent=5 // pred_check_branch
      %1157 = sbr.rel (%p1155) target = $region56
    $region55: #{pinn_forward_batched.1} parent=5 // pred_region
      %s1158 = ssub.s32 %s13, 2
      // Predicated region
      $region57: #{pinn_forward_batched.1} parent=55 // pred_check
        %p1159 = pneg %p194
      $region58: #{pinn_forward_batched.1} parent=55 // pred_check_branch
        %1161 = sbr.rel (%p1159) target = $region60
      $region59: #{pinn_forward_batched.1} parent=55 // pred_region
        %p1162 = scmp.lt.s32.totalorder %s19, 1
        %s1163 = scalar_select %p1162, %s19, 1
        %s1164 = smul.addr %s1163, 4
        %s1165 = scalar_lea.vmem %s7, %s1164
      $region60: #{pinn_forward_batched.1} parent=55 // pred_fallthru
        _
    $region56: #{pinn_forward_batched.1} parent=5 // pred_fallthru
      _
  $region6: #{pinn_forward_batched.1} parent=0 // loop_footer
    %s17 = sadd.s32 1, %s13
  $region7: #{pinn_forward_batched.1} parent=0 // loop_footer_branch
    %12 = sbr.rel target = $region3
  $region8: #{pinn_forward_batched.1} parent=0 // loop_exit
    _

</llo_original>
